<compile_context>
chip_gen: v7x
topology: tpu7x:2x2x1
jax: 0.10.0
libtpu: 0.0.40
codegen_flags: <defaults>
</compile_context>

<pallas_src>
import functools
import math

import jax
import jax.numpy as jnp
from jax.experimental import pallas as pl
from jax.experimental.pallas import tpu as pltpu

BN_EPS = 1e-5
LANE = 128
P_RESIDENT_BUDGET = 8 * 1024 * 1024  # bytes of projected features kept resident in VMEM


def _round_up(x, m):
    return ((x + m - 1) // m) * m


def _tiling(n):
    """(row tile, K tile, padded node count) for the adjacency contraction."""
    if n <= 1024:
        n_pad = _round_up(n, LANE)
        tk = n_pad                                   # single K step
        tm = n_pad if n_pad <= 256 else n_pad // 2   # >= 2 row tiles -> both TCs (v7x)
        return tm, tk, n_pad
    # Large graphs: 512 x 2048 bf16 adjacency panels (2 MiB/step) keep the
    # ~0.35 us per-grid-step overhead well under the DMA time -> near HBM
    # roofline; double-buffered panels + resident P stay far below 64 MiB VMEM.
    tm, tk = 512, 2048
    return tm, tk, _round_up(n, 2048)


def _compiler_params(semantics, vmem_bytes):
    # >= 16 MiB scoped VMEM, <= 48 MiB so the config also fits v7x's 64 MiB.
    limit = int(min(max(2 * vmem_bytes, 16 << 20), 48 << 20))
    return pltpu.CompilerParams(dimension_semantics=semantics,
                                vmem_limit_bytes=limit)


# ------------------------------------------------------------------ projections
def proj_kernel(x_ref, w_ref, out_ref):
    # out = x @ w (row tile); f32 MXU accumulation, bf16 output feeds the
    # adjacency aggregation.
    out_ref[...] = jnp.dot(x_ref[...], w_ref[...],
                           preferred_element_type=jnp.float32).astype(out_ref.dtype)


def bn_relu_proj_kernel(h_ref, scale_ref, shift_ref, w_ref, out_ref):
    # out = relu(h * scale + shift) @ w  (BatchNorm affine folded into scale/shift).
    h = h_ref[...].astype(jnp.float32) * scale_ref[...] + shift_ref[...]
    h = jnp.maximum(h, 0.0)
    out_ref[...] = jnp.dot(h.astype(w_ref.dtype), w_ref[...],
                           preferred_element_type=jnp.float32).astype(out_ref.dtype)


def _project(x, w, *, tm):
    n_pad, fin = x.shape
    fout = w.shape[1]
    vmem = 2 * tm * fin * 2 + 2 * fin * fout * 2 + 2 * tm * fout * 2
    return pl.pallas_call(
        proj_kernel,
        out_shape=jax.ShapeDtypeStruct((n_pad, fout), jnp.bfloat16),
        grid=(n_pad // tm,),
        in_specs=[pl.BlockSpec((tm, fin), lambda i: (i, 0)),
                  pl.BlockSpec((fin, fout), lambda i: (0, 0))],
        out_specs=pl.BlockSpec((tm, fout), lambda i: (i, 0)),
        compiler_params=_compiler_params(("parallel",), vmem),
    )(x, w)


def _bn_relu_project(h, scale, shift, w, *, tm):
    n_pad, hin = h.shape
    fout = w.shape[1]
    vmem = 2 * tm * hin * 2 + 2 * hin * fout * 2 + 2 * tm * fout * 2 + 4 * hin * 4
    return pl.pallas_call(
        bn_relu_proj_kernel,
        out_shape=jax.ShapeDtypeStruct((n_pad, fout), jnp.bfloat16),
        grid=(n_pad // tm,),
        in_specs=[pl.BlockSpec((tm, hin), lambda i: (i, 0)),
                  pl.BlockSpec((1, hin), lambda i: (0, 0)),
                  pl.BlockSpec((1, hin), lambda i: (0, 0)),
                  pl.BlockSpec((hin, fout), lambda i: (0, 0))],
        out_specs=pl.BlockSpec((tm, fout), lambda i: (i, 0)),
        compiler_params=_compiler_params(("parallel",), vmem),
    )(h, scale, shift, w)


# ----------------------------------------------- adjacency aggregation (A @ P + b)
def _p_panel(p_ref, k, tk, p_resident):
    """K-panel of the projected features (slice of the VMEM-resident P, or the
    streamed block when P does not fit)."""
    if not p_resident:
        return p_ref[...]
    start = pl.multiple_of(k * tk, tk)
    return p_ref[pl.ds(start, tk), :]


def aggregate_kernel(adj_ref, p_ref, b_ref, out_ref, *, tk, p_resident):
    # OUT = A_hat @ P + b, accumulated directly into the f32 output block
    # (output block index is constant along k -> VMEM resident; no scratch).
    k = pl.program_id(1)

    @pl.when(k == 0)
    def _():
        out_ref[...] = jnp.broadcast_to(b_ref[...], out_ref.shape)

    out_ref[...] += jnp.dot(adj_ref[...], _p_panel(p_ref, k, tk, p_resident),
                            preferred_element_type=jnp.float32)


def aggregate_stats_kernel(adj_ref, p_ref, b_ref, out_ref, sum_ref, sumsq_ref,
                           acc_ref, *, tk, p_resident, tile_m, num_valid_rows):
    # H = A_hat @ P + b (bf16 output) plus per-row-tile BatchNorm partial
    # statistics computed from the f32 accumulator before the bf16 downcast.
    # NOTE: pl.program_id / pl.num_programs are read only at the kernel top
    # level (never inside a pl.when body) so the kernel lowers everywhere.
    k = pl.program_id(1)
    last_k = pl.num_programs(1) - 1
    row_start = pl.program_id(0) * tile_m

    @pl.when(k == 0)
    def _():
        acc_ref[...] = jnp.zeros_like(acc_ref)

    acc_ref[...] += jnp.dot(adj_ref[...], _p_panel(p_ref, k, tk, p_resident),
                            preferred_element_type=jnp.float32)

    @pl.when(k == last_k)
    def _():
        h = acc_ref[...] + b_ref[...]
        out_ref[...] = h.astype(out_ref.dtype)
        # Mask padded rows so they do not pollute the batch mean / variance.
        rows = jax.lax.broadcasted_iota(jnp.int32, (tile_m, 1), 0) + row_start
        hm = h * (rows < num_valid_rows).astype(jnp.float32)
        sum_ref[...] = jnp.sum(hm, axis=0).reshape(1, 1, -1)
        sumsq_ref[...] = jnp.sum(hm * hm, axis=0).reshape(1, 1, -1)


def _aggregate(adj, p, bias, *, tm, tk, with_stats=False, num_valid_rows=None):
    n_pad = adj.shape[0]
    d = p.shape[1]
    grid = (n_pad // tm, n_pad // tk)

    p_bytes = p.size * p.dtype.itemsize
    p_resident = p_bytes <= P_RESIDENT_BUDGET
    if p_resident:
        # Whole projected panel stays in VMEM (constant block index) instead of
        # being re-streamed from HBM once per row tile.
        p_spec = pl.BlockSpec((n_pad, d), lambda i, k: (0, 0))
        p_stream_bytes = p_bytes
        p_vmem = 2 * p_bytes
    else:
        p_spec = pl.BlockSpec((tk, d), lambda i, k: (k, 0))
        p_stream_bytes = p_bytes * grid[0]
        p_vmem = 2 * tk * d * p.dtype.itemsize

    in_specs = [
        pl.BlockSpec((tm, tk), lambda i, k: (i, k)),   # bf16 adjacency panel
        p_spec,                                        # projected features
        pl.BlockSpec((1, d), lambda i, k: (0, 0)),     # bias
    ]
    # TODO(synk): fp8 (v7x) / int8 (v5e, v6e) adjacency would halve the dominant
    # HBM stream; not enabled pending accuracy validation on real graphs.

    out_item = 2 if with_stats else 4
    vmem = (2 * tm * tk * adj.dtype.itemsize + p_vmem + 2 * tm * d * out_item
            + (tm * d * 4 if with_stats else 0) + 8 * d * 4)
    cparams = _compiler_params(("parallel", "arbitrary"), vmem)
    cost = pl.CostEstimate(
        flops=2 * n_pad * n_pad * d,
        transcendentals=0,
        bytes_accessed=(adj.size * adj.dtype.itemsize + p_stream_bytes
                        + n_pad * d * out_item),
    )

    if with_stats:
        kernel = functools.partial(aggregate_stats_kernel, tk=tk,
                                   p_resident=p_resident, tile_m=tm,
                                   num_valid_rows=num_valid_rows)
        out_shape = (
            jax.ShapeDtypeStruct((n_pad, d), jnp.bfloat16),       # H (bf16)
            jax.ShapeDtypeStruct((grid[0], 1, d), jnp.float32),   # per-tile sum
            jax.ShapeDtypeStruct((grid[0], 1, d), jnp.float32),   # per-tile sumsq
        )
        out_specs = (
            pl.BlockSpec((tm, d), lambda i, k: (i, 0)),
            pl.BlockSpec((1, 1, d), lambda i, k: (i, 0, 0)),
            pl.BlockSpec((1, 1, d), lambda i, k: (i, 0, 0)),
        )
        scratch = [pltpu.VMEM((tm, d), jnp.float32)]   # f32 acc (bf16 output)
    else:
        kernel = functools.partial(aggregate_kernel, tk=tk, p_resident=p_resident)
        out_shape = jax.ShapeDtypeStruct((n_pad, d), jnp.float32)
        out_specs = pl.BlockSpec((tm, d), lambda i, k: (i, 0))
        scratch = []

    return pl.pallas_call(
        kernel,
        out_shape=out_shape,
        grid=grid,
        in_specs=in_specs,
        out_specs=out_specs,
        scratch_shapes=scratch,
        compiler_params=cparams,
        cost_estimate=cost,
    )(adj, p, bias)


# ---------------------------------------------------------------- preprocessing
def build_normalized_adjacency(edge_index, num_nodes, num_padded=None,
                               dtype=jnp.float32):
    """A_hat = D^-1/2 (A + I) D^-1/2 matching PyG gcn_norm semantics, built
    directly into the (num_padded, num_padded) buffer and cast once.

    Duplicate edges accumulate (scatter-add); self-loops are only added for
    nodes that do not already have one (add_remaining_self_loops)."""
    if num_padded is None:
        num_padded = num_nodes
    src, dst = edge_index[0], edge_index[1]
    a = jnp.zeros((num_padded, num_padded), jnp.float32)
    a = a.at[dst, src].add(1.0)                        # A[i, j]: message edge j -> i
    idx = jnp.arange(num_nodes)
    diag = a[idx, idx]
    a = a.at[idx, idx].set(jnp.where(diag > 0, diag, 1.0))
    deg = jnp.sum(a, axis=1)
    dinv = jnp.where(deg > 0, jax.lax.rsqrt(jnp.maximum(deg, 1e-12)), 0.0)
    return (a * dinv[:, None] * dinv[None, :]).astype(dtype)


# -------------------------------------------------------------------- forward
def gcn_forward(x, edge_index, params, *, tiling=None):
    n, f = x.shape
    hdim = params["w1"].shape[1]
    odim = params["w2"].shape[1]

    if tiling is None:
        tm, tk, n_pad = _tiling(n)
    else:
        tm, tk = tiling
        n_pad = _round_up(n, math.lcm(tm, tk))

    f_pad = _round_up(f, LANE)
    h_pad = _round_up(hdim, LANE)
    o_pad = _round_up(odim, LANE)

    # Dense normalized adjacency, built at padded size and cast to bf16 once.
    adj = build_normalized_adjacency(edge_index, n, n_pad, jnp.bfloat16)
    # TODO(synk): for large sparse graphs a gather-based aggregation with
    # scalar-prefetched neighbour tables (no dense N x N A_hat) would dominate.

    xp = jnp.zeros((n_pad, f_pad), jnp.bfloat16).at[:n, :f].set(
        x.astype(jnp.bfloat16))
    w1 = jnp.zeros((f_pad, h_pad), jnp.bfloat16).at[:f, :hdim].set(
        params["w1"].astype(jnp.bfloat16))
    b1 = jnp.zeros((1, h_pad), jnp.float32).at[0, :hdim].set(params["b1"])
    gamma = jnp.ones((h_pad,), jnp.float32).at[:hdim].set(params["gamma"])
    beta = jnp.zeros((h_pad,), jnp.float32).at[:hdim].set(params["beta"])
    w2 = jnp.zeros((h_pad, o_pad), jnp.bfloat16).at[:hdim, :odim].set(
        params["w2"].astype(jnp.bfloat16))
    b2 = jnp.zeros((1, o_pad), jnp.float32).at[0, :odim].set(params["b2"])

    # Layer 1: X @ W1 hoisted out of the A-reduction, then tiled aggregation
    # that also emits per-row-tile BatchNorm partial statistics.
    p1 = _project(xp, w1, tm=tm)
    h, psum, psumsq = _aggregate(adj, p1, b1, tm=tm, tk=tk,
                                 with_stats=True, num_valid_rows=n)

    # BatchNorm1d (training-mode batch statistics, biased variance) folded into
    # a per-feature scale / shift.
    # TODO(synk): E[x^2]-E[x]^2 can cancel for features with large means; a
    # shifted / two-pass variance would be more robust for such activations.
    total = jnp.sum(psum, axis=0).reshape(-1)
    totalsq = jnp.sum(psumsq, axis=0).reshape(-1)
    mean = total / n
    var = jnp.maximum(totalsq / n - mean * mean, 0.0)
    scale = gamma * jax.lax.rsqrt(var + BN_EPS)
    shift = beta - mean * scale

    # Layer 2: fused BN + ReLU + projection, then tiled aggregation.
    p2 = _bn_relu_project(h, scale.reshape(1, -1), shift.reshape(1, -1),
                          w2, tm=tm)
    out = _aggregate(adj, p2, b2, tm=tm, tk=tk)

    return out[:n, :odim]


# ------------------------------------------------------------------ reference
def gcn_reference(x, edge_index, params):
    """Pure-JAX f32 reference of the same forward pass."""
    adj = build_normalized_adjacency(edge_index, x.shape[0])
    h = adj @ (x @ params["w1"]) + params["b1"]
    mean = jnp.mean(h, axis=0, keepdims=True)
    var = jnp.mean((h - mean) ** 2, axis=0, keepdims=True)
    h = (h - mean) * jax.lax.rsqrt(var + BN_EPS)
    h = h * params["gamma"] + params["beta"]
    h = jnp.maximum(h, 0.0)
    return adj @ (h @ params["w2"]) + params["b2"]


def init_params(key, feature_dims, hidden_dims, out_dims):
    k1, k2 = jax.random.split(key)
    s1 = (6.0 / (feature_dims + hidden_dims)) ** 0.5
    s2 = (6.0 / (hidden_dims + out_dims)) ** 0.5
    return {
        "w1": jax.random.uniform(k1, (feature_dims, hidden_dims),
                                 jnp.float32, -s1, s1),
        "b1": jnp.zeros((hidden_dims,), jnp.float32),
        "gamma": jnp.ones((hidden_dims,), jnp.float32),
        "beta": jnp.zeros((hidden_dims,), jnp.float32),
        "w2": jax.random.uniform(k2, (hidden_dims, out_dims),
                                 jnp.float32, -s2, s2),
        "b2": jnp.zeros((out_dims,), jnp.float32),
    }


def _make_graph(key, num_nodes, num_edges, feature_dims):
    kx, ks, kd = jax.random.split(key, 3)
    x = jax.random.normal(kx, (num_nodes, feature_dims), jnp.float32)
    edge_index = jnp.stack([
        jax.random.randint(ks, (num_edges,), 0, num_nodes),
        jax.random.randint(kd, (num_edges,), 0, num_nodes),
    ]).astype(jnp.int32)
    return x, edge_index


if __name__ == "__main__":
    feature_dims, hidden_dims, out_dims = 16, 32, 8
    key = jax.random.PRNGKey(0)
    kg1, kg2, kp = jax.random.split(key, 3)
    params = init_params(kp, feature_dims, hidden_dims, out_dims)

    # Test 1: tiny graph, default tiling (single-tile path).
    x1, ei1 = _make_graph(kg1, 8, 16, feature_dims)
    out1 = gcn_forward(x1, ei1, params)
    jax.block_until_ready(out1)
    ref1 = gcn_reference(x1, ei1, params)
    assert out1.shape == (8, out_dims)
    assert jnp.allclose(out1, ref1, atol=5e-2, rtol=5e-2), (
        float(jnp.max(jnp.abs(out1 - ref1))))

    # Test 2: mid-size graph with forced small tiles -> exercises the multi-
    # row-tile grid, the K-reduction accumulator and the padded-row BN masking.
    x2, ei2 = _make_graph(kg2, 300, 900, feature_dims)
    out2 = gcn_forward(x2, ei2, params, tiling=(128, 128))
    jax.block_until_ready(out2)
    ref2 = gcn_reference(x2, ei2, params)
    assert out2.shape == (300, out_dims)
    assert jnp.allclose(out2, ref2, atol=1e-1, rtol=1e-1), (
        float(jnp.max(jnp.abs(out2 - ref2))))

    print("KERNEL_OK")
</pallas_src>

<mosaic_0001>
module attributes {stable_mosaic.version = 11 : i64} {
  func.func @proj_kernel(%arg0: i32, %arg1: memref<128x128xbf16, #tpu.memory_space<vmem>>, %arg2: memref<128x128xbf16, #tpu.memory_space<vmem>>, %arg3: memref<128x128xbf16, #tpu.memory_space<vmem>>) attributes {dimension_semantics = [#tpu.dimension_semantics<parallel>], iteration_bounds = array<i64: 1>, scalar_prefetch = 0 : i64, scratch_operands = 0 : i64, tpu.core_type = #tpu.core_type<tc>, window_params = [{transform_indices = @transform_0, window_bounds = array<i64: 128, 128>}, {pipeline_mode = #tpu.pipeline_mode<synchronous>, transform_indices = @transform_1, window_bounds = array<i64: 128, 128>}, {transform_indices = @transform_2, window_bounds = array<i64: 128, 128>}]} {
    %c0 = arith.constant 0 : index
    %c0_0 = arith.constant 0 : index
    %0 = vector.load %arg1[%c0, %c0_0] : memref<128x128xbf16, #tpu.memory_space<vmem>>, vector<128x128xbf16>
    %c0_1 = arith.constant 0 : index
    %c0_2 = arith.constant 0 : index
    %1 = vector.load %arg2[%c0_1, %c0_2] : memref<128x128xbf16, #tpu.memory_space<vmem>>, vector<128x128xbf16>
    %cst = arith.constant dense<0.000000e+00> : vector<128x128xf32>
    %2 = tpu.matmul %0, %1, %cst {dimension_numbers = #tpu.dot_dimension_numbers<[1], [0], [0], [1], [0, 0, 1, 1], [], []>} : vector<128x128xbf16>, vector<128x128xbf16>, vector<128x128xf32> -> vector<128x128xf32>
    %3 = arith.truncf %2 : vector<128x128xf32> to vector<128x128xbf16>
    %c0_3 = arith.constant 0 : index
    %c0_4 = arith.constant 0 : index
    %4 = vector.load %arg3[%c0_3, %c0_4] : memref<128x128xbf16, #tpu.memory_space<vmem>>, vector<128x128xbf16>
    tpu.vector_store %arg3[%c0_3, %c0_4], %3 {strides = array<i32>} : memref<128x128xbf16, #tpu.memory_space<vmem>>, vector<128x128xbf16>,
    return
  }
  func.func @transform_0(%arg0: i32) -> (i32, i32) {
    %c0_i32 = arith.constant 0 : i32
    %c0_i32_0 = arith.constant 0 : i32
    return %arg0, %c0_i32 : i32, i32
  }
  func.func @transform_1(%arg0: i32) -> (i32, i32) {
    %c0_i32 = arith.constant 0 : i32
    %c0_i32_0 = arith.constant 0 : i32
    %c0_i32_1 = arith.constant 0 : i32
    return %c0_i32, %c0_i32_0 : i32, i32
  }
  func.func @transform_2(%arg0: i32) -> (i32, i32) {
    %c0_i32 = arith.constant 0 : i32
    %c0_i32_0 = arith.constant 0 : i32
    return %arg0, %c0_i32 : i32, i32
  }
}

</mosaic_0001>

<llo_original>
// kernel: tpu_custom_call.1
$region0: #{tpu_custom_call.1}
  #allocation0 [shape = 'u32[]', space=smem, size = 0x4, offset = 0x4, fixed_abs, tag = 'smem constant byte address 0x4 - core index']
  #allocation1 [shape = 'u32[144,128]{1,0:T(1,128)}', space=vmem, size = 0x12000, scoped, tag = 'internal scratch']
  %s0 = inlined_call_operand.hbm [shape: bf16[128,128], index: 0, kind: input, shape index: {}]
  %s1 = inlined_call_operand.hbm [shape: bf16[128,128], index: 1, kind: input, shape index: {}]
  %s2 = inlined_call_operand.hbm [shape: bf16[128,128], index: 2, kind: output, shape index: {}]
  %s3 = sld [smem:[#allocation0]]
  $region26: #{tpu_custom_call.1} parent=0
    _
  %s5 = ssub.s32 1, %s3
  %s6 = scalar_select 0, %s5, %s3
  $region1: #{tpu_custom_call.1} parent=0
    #allocation2 [shape = 'u8[32768]{0}', space=vmem, size = 0x8000, scoped, tag = 'input window, operand 0, single buffered']
    #allocation3 [shape = 's32[1]{0}', space=sflag, size = 0x4, scoped, tag = 'scoped memory for tpu_custom_call.1']
    #allocation4 [shape = 's32[1]{0}', space=sflag, size = 0x4, scoped, tag = 'scoped memory for tpu_custom_call.1']
    #allocation5 [shape = 'u8[32768]{0}', space=vmem, size = 0x8000, scoped, tag = 'input window, operand 1, single buffered']
    #allocation6 [shape = 's32[1]{0}', space=sflag, size = 0x4, scoped, tag = 'scoped memory for tpu_custom_call.1']
    #allocation7 [shape = 'u8[32768]{0}', space=vmem, size = 0x8000, scoped, tag = 'output window, operand 0, single buffered']
    %7 = vsyncpa [#allocation3], 0
    %8 = vsyncpa [#allocation6], 0
    %9 = vsyncpa [#allocation4], 0
    // Predicated region
    $region2: #{tpu_custom_call.1} parent=1 // pred_check
      _
    $region3: #{tpu_custom_call.1} parent=1 // pred_check_branch
      %11 = sbr.rel (0) target = $region5
    $region4: #{tpu_custom_call.1} parent=1 // pred_region
      %s13 = ssub.s32 1024, 1024
      %14 = vsyncadd [#allocation3], %s13
      %s15 = sshll.u32 [#allocation2], 4
      %s16 = int_to_ptr.vmem [resolvable:$true] %s15
      %21 = dma.hbm_to_vmem [thread:$0]  %s0, 1024, %s16, [#allocation3], 64, 64, 4
    $region5: #{tpu_custom_call.1} parent=1 // pred_fallthru
      _
    // Predicated region
    $region6: #{tpu_custom_call.1} parent=1 // pred_check
      _
    $region7: #{tpu_custom_call.1} parent=1 // pred_check_branch
      %23 = sbr.rel (0) target = $region9
    $region8: #{tpu_custom_call.1} parent=1 // pred_region
      %s25 = ssub.s32 1024, 1024
      %26 = vsyncadd [#allocation6], %s25
      %s27 = sshll.u32 [#allocation5], 4
      %s28 = int_to_ptr.vmem [resolvable:$true] %s27
      %33 = dma.hbm_to_vmem [thread:$0]  %s1, 1024, %s28, [#allocation6], 64, 64, 4
    $region9: #{tpu_custom_call.1} parent=1 // pred_fallthru
      _
    // Predicated region
    $region10: #{tpu_custom_call.1} parent=1 // pred_check
      _
    $region11: #{tpu_custom_call.1} parent=1 // pred_check_branch
      %35 = sbr.rel (0) target = $region13
    $region12: #{tpu_custom_call.1} parent=1 // pred_region
      %36 = dma.done [#allocation3], 1024
    $region13: #{tpu_custom_call.1} parent=1 // pred_fallthru
      _
    // Predicated region
    $region14: #{tpu_custom_call.1} parent=1 // pred_check
      _
    $region15: #{tpu_custom_call.1} parent=1 // pred_check_branch
      %38 = sbr.rel (0) target = $region17
    $region16: #{tpu_custom_call.1} parent=1 // pred_region
      %39 = dma.done [#allocation6], 1024
    $region17: #{tpu_custom_call.1} parent=1 // pred_fallthru
      _
    %v41 = vld [vmem:[#allocation2] sm:$0xf]
    %v42 = vld [vmem:[#allocation2 + $0x4] sm:$0xf]
    %v43 = vld [vmem:[#allocation2 + $0x8] sm:$0xf]
    %v44 = vld [vmem:[#allocation2 + $0xc] sm:$0xf]
    %v45 = vld [vmem:[#allocation2 + $0x10] sm:$0xf]
    %v46 = vld [vmem:[#allocation2 + $0x14] sm:$0xf]
    %v47 = vld [vmem:[#allocation2 + $0x18] sm:$0xf]
    %v48 = vld [vmem:[#allocation2 + $0x1c] sm:$0xf]
    %v49 = vld [vmem:[#allocation2 + $0x20] sm:$0xf]
    %v50 = vld [vmem:[#allocation2 + $0x24] sm:$0xf]
    %v51 = vld [vmem:[#allocation2 + $0x28] sm:$0xf]
    %v52 = vld [vmem:[#allocation2 + $0x2c] sm:$0xf]
    %v53 = vld [vmem:[#allocation2 + $0x30] sm:$0xf]
    %v54 = vld [vmem:[#allocation2 + $0x34] sm:$0xf]
    %v55 = vld [vmem:[#allocation2 + $0x38] sm:$0xf]
    %v56 = vld [vmem:[#allocation2 + $0x3c] sm:$0xf]
    %v57 = vld [vmem:[#allocation5] sm:$0xf]
    %v58 = vld [vmem:[#allocation5 + $0x4] sm:$0xf]
    %v59 = vld [vmem:[#allocation5 + $0x8] sm:$0xf]
    %v60 = vld [vmem:[#allocation5 + $0xc] sm:$0xf]
    %v61 = vld [vmem:[#allocation5 + $0x10] sm:$0xf]
    %v62 = vld [vmem:[#allocation5 + $0x14] sm:$0xf]
    %v63 = vld [vmem:[#allocation5 + $0x18] sm:$0xf]
    %v64 = vld [vmem:[#allocation5 + $0x1c] sm:$0xf]
    %v65 = vld [vmem:[#allocation5 + $0x20] sm:$0xf]
    %v66 = vld [vmem:[#allocation5 + $0x24] sm:$0xf]
    %v67 = vld [vmem:[#allocation5 + $0x28] sm:$0xf]
    %v68 = vld [vmem:[#allocation5 + $0x2c] sm:$0xf]
    %v69 = vld [vmem:[#allocation5 + $0x30] sm:$0xf]
    %v70 = vld [vmem:[#allocation5 + $0x34] sm:$0xf]
    %v71 = vld [vmem:[#allocation5 + $0x38] sm:$0xf]
    %v72 = vld [vmem:[#allocation5 + $0x3c] sm:$0xf]
    %v89 = vunpack.c.l.b16 %v41
    %v90 = vunpack.c.l.b16 %v42
    %v91 = vunpack.c.l.b16 %v43
    %v92 = vunpack.c.l.b16 %v44
    %v93 = vunpack.c.l.b16 %v45
    %v94 = vunpack.c.l.b16 %v46
    %v95 = vunpack.c.l.b16 %v47
    %v96 = vunpack.c.l.b16 %v48
    %v97 = vunpack.c.l.b16 %v49
    %v98 = vunpack.c.l.b16 %v50
    %v99 = vunpack.c.l.b16 %v51
    %v100 = vunpack.c.l.b16 %v52
    %v101 = vunpack.c.l.b16 %v53
    %v102 = vunpack.c.l.b16 %v54
    %v103 = vunpack.c.l.b16 %v55
    %v104 = vunpack.c.l.b16 %v56
    %v105 = vpack.c.b16 %v90, %v89
    %v106 = vpack.c.b16 %v92, %v91
    %v107 = vpack.c.b16 %v94, %v93
    %v108 = vpack.c.b16 %v96, %v95
    %v109 = vpack.c.b16 %v98, %v97
    %v110 = vpack.c.b16 %v100, %v99
    %v111 = vpack.c.b16 %v102, %v101
    %v112 = vpack.c.b16 %v104, %v103
    %v137 = vunpack.c.l.b16 %v57
    %v138 = vunpack.c.l.b16 %v58
    %v139 = vunpack.c.l.b16 %v59
    %v140 = vunpack.c.l.b16 %v60
    %v141 = vunpack.c.l.b16 %v61
    %v142 = vunpack.c.l.b16 %v62
    %v143 = vunpack.c.l.b16 %v63
    %v144 = vunpack.c.l.b16 %v64
    %v145 = vunpack.c.l.b16 %v65
    %v146 = vunpack.c.l.b16 %v66
    %v147 = vunpack.c.l.b16 %v67
    %v148 = vunpack.c.l.b16 %v68
    %v149 = vunpack.c.l.b16 %v69
    %v150 = vunpack.c.l.b16 %v70
    %v151 = vunpack.c.l.b16 %v71
    %v152 = vunpack.c.l.b16 %v72
    %v153 = vpack.c.b16 %v138, %v137
    %v154 = vpack.c.b16 %v140, %v139
    %v155 = vpack.c.b16 %v142, %v141
    %v156 = vpack.c.b16 %v144, %v143
    %v157 = vpack.c.b16 %v146, %v145
    %v158 = vpack.c.b16 %v148, %v147
    %v159 = vpack.c.b16 %v150, %v149
    %v160 = vpack.c.b16 %v152, %v151
    %169 = vmatprep.subr.bf16.mxu0 0
    %170 = vmatpush1.bf16.msra.mxu0 %v153
    %171 = vmatprep.subr.bf16.mxu0 0
    %172 = vmatpush1.bf16.msra.mxu0 %v154
    %173 = vmatprep.subr.bf16.mxu0 0
    %174 = vmatpush1.bf16.msra.mxu0 %v155
    %175 = vmatprep.subr.bf16.mxu0 0
    %176 = vmatpush1.bf16.msra.mxu0 %v156
    %177 = vmatprep.subr.bf16.mxu0 0
    %178 = vmatpush1.bf16.msra.mxu0 %v157
    %179 = vmatprep.subr.bf16.mxu0 0
    %180 = vmatpush1.bf16.msra.mxu0 %v158
    %181 = vmatprep.subr.bf16.mxu0 0
    %182 = vmatpush1.bf16.msra.mxu0 %v159
    %183 = vmatprep.subr.bf16.mxu0 0
    %184 = vmatpush1.bf16.msra.mxu0 %v160
    %185 = vmatprep.subr.bf16.mxu0 0
    %186 = vmatpush1.bf16.msra.mxu0 0
    %187 = vmatprep.subr.bf16.mxu0 0
    %188 = vmatpush1.bf16.msra.mxu0 0
    %189 = vmatprep.subr.bf16.mxu0 0
    %190 = vmatpush1.bf16.msra.mxu0 0
    %191 = vmatprep.subr.bf16.mxu0 0
    %192 = vmatpush1.bf16.msra.mxu0 0
    %193 = vmatprep.subr.bf16.mxu0 0
    %194 = vmatpush1.bf16.msra.mxu0 0
    %195 = vmatprep.subr.bf16.mxu0 0
    %196 = vmatpush1.bf16.msra.mxu0 0
    %197 = vmatprep.subr.bf16.mxu0 0
    %198 = vmatpush1.bf16.msra.mxu0 0
    %199 = vmatprep.subr.bf16.mxu0 0
    %200 = vmatpush1.bf16.msra.mxu0 0
    %201 = vmatprep.mubr.bf16.mxu0 0
    %202 = vmatmul.mubr.bf16.gmra.mrb[0].mxu0 %v105
    %v203 = vpop.f32.mrb[0].mxu0
    %v204 = vadd.f32 0.0, %v203
    %v205 = vpop.f32.mrb[0].mxu0
    %v206 = vpop.f32.mrb[0].mxu0
    %v207 = vadd.f32 0.0, %v206
    %v208 = vpop.f32.mrb[0].mxu0
    %209 = vmatprep.mubr.bf16.mxu0 0
    %210 = vmatmul.mubr.bf16.gmra.mrb[0].mxu0 %v106
    %v211 = vpop.f32.mrb[0].mxu0
    %v212 = vadd.f32 0.0, %v211
    %v213 = vpop.f32.mrb[0].mxu0
    %v214 = vpop.f32.mrb[0].mxu0
    %v215 = vadd.f32 0.0, %v214
    %v216 = vpop.f32.mrb[0].mxu0
    %217 = vmatprep.mubr.bf16.mxu0 0
    %218 = vmatmul.mubr.bf16.gmra.mrb[0].mxu0 %v107
    %v219 = vpop.f32.mrb[0].mxu0
    %v220 = vadd.f32 0.0, %v219
    %v221 = vpop.f32.mrb[0].mxu0
    %v222 = vpop.f32.mrb[0].mxu0
    %v223 = vadd.f32 0.0, %v222
    %v224 = vpop.f32.mrb[0].mxu0
    %225 = vmatprep.mubr.bf16.mxu0 0
    %226 = vmatmul.mubr.bf16.gmra.mrb[0].mxu0 %v108
    %v227 = vpop.f32.mrb[0].mxu0
    %v228 = vadd.f32 0.0, %v227
    %v229 = vpop.f32.mrb[0].mxu0
    %v230 = vpop.f32.mrb[0].mxu0
    %v231 = vadd.f32 0.0, %v230
    %v232 = vpop.f32.mrb[0].mxu0
    %233 = vmatprep.mubr.bf16.mxu0 0
    %234 = vmatmul.mubr.bf16.gmra.mrb[0].mxu0 %v109
    %v235 = vpop.f32.mrb[0].mxu0
    %v236 = vadd.f32 0.0, %v235
    %v237 = vpop.f32.mrb[0].mxu0
    %v238 = vpop.f32.mrb[0].mxu0
    %v239 = vadd.f32 0.0, %v238
    %v240 = vpop.f32.mrb[0].mxu0
    %241 = vmatprep.mubr.bf16.mxu0 0
    %242 = vmatmul.mubr.bf16.gmra.mrb[0].mxu0 %v110
    %v243 = vpop.f32.mrb[0].mxu0
    %v244 = vadd.f32 0.0, %v243
    %v245 = vpop.f32.mrb[0].mxu0
    %v246 = vpop.f32.mrb[0].mxu0
    %v247 = vadd.f32 0.0, %v246
    %v248 = vpop.f32.mrb[0].mxu0
    %249 = vmatprep.mubr.bf16.mxu0 0
    %250 = vmatmul.mubr.bf16.gmra.mrb[0].mxu0 %v111
    %v251 = vpop.f32.mrb[0].mxu0
    %v252 = vadd.f32 0.0, %v251
    %v253 = vpop.f32.mrb[0].mxu0
    %v254 = vpop.f32.mrb[0].mxu0
    %v255 = vadd.f32 0.0, %v254
    %v256 = vpop.f32.mrb[0].mxu0
    %257 = vmatprep.mubr.bf16.mxu0 0
    %258 = vmatmul.mubr.bf16.gmra.mrb[0].mxu0 %v112
    %v259 = vpop.f32.mrb[0].mxu0
    %v260 = vadd.f32 0.0, %v259
    %v261 = vpop.f32.mrb[0].mxu0
    %v262 = vpop.f32.mrb[0].mxu0
    %v263 = vadd.f32 0.0, %v262
    %v264 = vpop.f32.mrb[0].mxu0
    %265 = vdwg.mxu0
    %v266 = vpack.c.bf16 %v207, %v204
    %v267 = vpack.c.bf16 %v215, %v212
    %v268 = vpack.c.bf16 %v223, %v220
    %v269 = vpack.c.bf16 %v231, %v228
    %v270 = vpack.c.bf16 %v239, %v236
    %v271 = vpack.c.bf16 %v247, %v244
    %v272 = vpack.c.bf16 %v255, %v252
    %v273 = vpack.c.bf16 %v263, %v260
    %v282 = vunpack.c.l.b16 %v266
    %v283 = vunpack.c.h.b16 %v266
    %v284 = vunpack.c.l.b16 %v267
    %v285 = vunpack.c.h.b16 %v267
    %v286 = vunpack.c.l.b16 %v268
    %v287 = vunpack.c.h.b16 %v268
    %v288 = vunpack.c.l.b16 %v269
    %v289 = vunpack.c.h.b16 %v269
    %v290 = vunpack.c.l.b16 %v270
    %v291 = vunpack.c.h.b16 %v270
    %v292 = vunpack.c.l.b16 %v271
    %v293 = vunpack.c.h.b16 %v271
    %v294 = vunpack.c.l.b16 %v272
    %v295 = vunpack.c.h.b16 %v272
    %v296 = vunpack.c.l.b16 %v273
    %v297 = vunpack.c.h.b16 %v273
    %v298 = vpack.c.b16 %v282, %v282
    %v299 = vpack.c.b16 %v283, %v283
    %v300 = vpack.c.b16 %v284, %v284
    %v301 = vpack.c.b16 %v285, %v285
    %v302 = vpack.c.b16 %v286, %v286
    %v303 = vpack.c.b16 %v287, %v287
    %v304 = vpack.c.b16 %v288, %v288
    %v305 = vpack.c.b16 %v289, %v289
    %v306 = vpack.c.b16 %v290, %v290
    %v307 = vpack.c.b16 %v291, %v291
    %v308 = vpack.c.b16 %v292, %v292
    %v309 = vpack.c.b16 %v293, %v293
    %v310 = vpack.c.b16 %v294, %v294
    %v311 = vpack.c.b16 %v295, %v295
    %v312 = vpack.c.b16 %v296, %v296
    %v313 = vpack.c.b16 %v297, %v297
    %330 = vst [vmem:[#allocation7] sm:$0xf] %v298
    %331 = vst [vmem:[#allocation7 + $0x4] sm:$0xf] %v299
    %332 = vst [vmem:[#allocation7 + $0x8] sm:$0xf] %v300
    %333 = vst [vmem:[#allocation7 + $0xc] sm:$0xf] %v301
    %334 = vst [vmem:[#allocation7 + $0x10] sm:$0xf] %v302
    %335 = vst [vmem:[#allocation7 + $0x14] sm:$0xf] %v303
    %336 = vst [vmem:[#allocation7 + $0x18] sm:$0xf] %v304
    %337 = vst [vmem:[#allocation7 + $0x1c] sm:$0xf] %v305
    %338 = vst [vmem:[#allocation7 + $0x20] sm:$0xf] %v306
    %339 = vst [vmem:[#allocation7 + $0x24] sm:$0xf] %v307
    %340 = vst [vmem:[#allocation7 + $0x28] sm:$0xf] %v308
    %341 = vst [vmem:[#allocation7 + $0x2c] sm:$0xf] %v309
    %342 = vst [vmem:[#allocation7 + $0x30] sm:$0xf] %v310
    %343 = vst [vmem:[#allocation7 + $0x34] sm:$0xf] %v311
    %344 = vst [vmem:[#allocation7 + $0x38] sm:$0xf] %v312
    %345 = vst [vmem:[#allocation7 + $0x3c] sm:$0xf] %v313
    // Predicated region
    $region18: #{tpu_custom_call.1} parent=1 // pred_check
      _
    $region19: #{tpu_custom_call.1} parent=1 // pred_check_branch
      %347 = sbr.rel (0) target = $region21
    $region20: #{tpu_custom_call.1} parent=1 // pred_region
      %s349 = ssub.s32 1024, 1024
      %350 = vsyncadd [#allocation4], %s349
      %s351 = sshll.u32 [#allocation7], 4
      %s352 = int_to_ptr.vmem [resolvable:$true] %s351
      %357 = dma.vmem_to_hbm [thread:$0]  %s352, 1024, %s2, [#allocation4], 64, 64, 4
    $region21: #{tpu_custom_call.1} parent=1 // pred_fallthru
      _
    // Predicated region
    $region22: #{tpu_custom_call.1} parent=1 // pred_check
      _
    $region23: #{tpu_custom_call.1} parent=1 // pred_check_branch
      %359 = sbr.rel (0) target = $region25
    $region24: #{tpu_custom_call.1} parent=1 // pred_region
      %360 = dma.done [#allocation4], 1024
    $region25: #{tpu_custom_call.1} parent=1 // pred_fallthru
      _
    %361 = vsyncpa [#allocation3], 1
    %362 = vsyncpa [#allocation6], 1
    %363 = vsyncpa [#allocation4], 1

</llo_original>
